<compile_context>
chip_gen: v7x
topology: tpu7x:2x2x1
jax: 0.10.0
libtpu: 0.0.40
codegen_flags: <defaults>
</compile_context>

<pallas_src>
import functools
import math

import jax
import jax.numpy as jnp
from jax.experimental import pallas as pl
from jax.experimental.pallas import tpu as pltpu


# --------------------------------------------------------------------------
# Kernels
# --------------------------------------------------------------------------
def _rowwise_softmax_kernel(x_ref, o_ref):
    """Softmax over the last (lane) axis; the full axis is resident in the tile."""
    x = x_ref[...].astype(jnp.float32)
    m = jnp.max(x, axis=-1, keepdims=True)
    e = jnp.exp(x - m)
    s = jnp.sum(e, axis=-1, keepdims=True)
    o_ref[...] = (e / s).astype(o_ref.dtype)


def _middle_axis_softmax_kernel(x_ref, o_ref):
    """Softmax over axis=1 (sublanes) of a (block_outer, cols, block_inner) tile."""
    x = x_ref[...].astype(jnp.float32)
    m = jnp.max(x, axis=1, keepdims=True)
    e = jnp.exp(x - m)
    s = jnp.sum(e, axis=1, keepdims=True)
    o_ref[...] = (e / s).astype(o_ref.dtype)


def _packed_softmax_kernel(x_ref, b_ref, o_ref, *, cols):
    """Lane-packed softmax: every aligned group of `cols` lanes (cols | 128) is
    one independent softmax row.

    Group max: XOR-butterfly of lane rotations (XLU slot, hidden under DMA),
    with the partner-selection masks built at (1, 128) and broadcast.
    Group sum: one matmul against the 128x128 block-diagonal ones matrix in
    b_ref -- the MXU is otherwise idle, so this reduction is free.
    """
    x = x_ref[...].astype(jnp.float32)
    w = x.shape[-1]                                       # 128
    lane = jax.lax.broadcasted_iota(jnp.int32, (1, w), 1)

    m = x
    s = 1
    while s < cols:
        # Whichever rotation delivers the XOR partner lane (robust to the
        # rotation direction convention).
        use_fwd = pltpu.roll(lane, s, axis=1) == (lane ^ s)
        r_fwd = pltpu.roll(m, s, axis=1)
        r_bwd = pltpu.roll(m, w - s, axis=1)
        m = jnp.maximum(m, jnp.where(use_fwd, r_fwd, r_bwd))
        s *= 2

    e = jnp.exp(x - m)
    denom = jnp.dot(e, b_ref[...], precision=jax.lax.Precision.HIGHEST,
                    preferred_element_type=jnp.float32)
    o_ref[...] = (e / denom).astype(o_ref.dtype)


def _stats_kernel(x_ref, m_ref, l_ref, *, block_cols, total_cols, masked):
    """Pass 1 of the two-pass (huge-cols) softmax: online per-row max / sum.

    The (rows, 1) outputs stay resident across the cols ("arbitrary") axis.
    """
    j = pl.program_id(1)

    @pl.when(j == 0)
    def _():
        m_ref[...] = jnp.full(m_ref.shape, -jnp.inf, jnp.float32)
        l_ref[...] = jnp.zeros(l_ref.shape, jnp.float32)

    x = x_ref[...].astype(jnp.float32)
    if masked:  # ragged last column block: drop out-of-range lanes from the stats
        col = j * block_cols + jax.lax.broadcasted_iota(
            jnp.int32, (1, block_cols), 1)
        x = jnp.where(col < total_cols, x, -jnp.inf)

    m_prev = m_ref[...]
    m_new = jnp.maximum(m_prev, jnp.max(x, axis=-1, keepdims=True))
    l_ref[...] = (l_ref[...] * jnp.exp(m_prev - m_new)
                  + jnp.sum(jnp.exp(x - m_new), axis=-1, keepdims=True))
    m_ref[...] = m_new


def _normalize_kernel(x_ref, m_ref, l_ref, o_ref):
    """Pass 2 of the two-pass softmax: exp(x - m) / l."""
    x = x_ref[...].astype(jnp.float32)
    o_ref[...] = (jnp.exp(x - m_ref[...]) / l_ref[...]).astype(o_ref.dtype)


# --------------------------------------------------------------------------
# Tiling helpers (generation-aware VMEM budget)
# --------------------------------------------------------------------------
def _tpu_caps():
    """Return (per-block byte budget, vmem_limit_bytes, min grid steps)."""
    cap = 0
    try:
        cap = int(getattr(pltpu.get_tpu_info(), "vmem_capacity_bytes", 0))
    except Exception:
        cap = 0
    if cap <= 0:
        cap = 64 << 20                       # conservative fallback (v7x per-core)
    vmem_limit = (cap * 3) // 4              # ~0.75x physical (96 MiB on v5e/v6e)
    block_budget = vmem_limit // 6           # dbl-buffered in/out + f32 temporaries
    # 64 MiB VMEM => v7x-class part with 2 TensorCores: keep >=4 grid steps so
    # both cores get work.  Single-TC v5e/v6e only need >=2 for pipelining.
    min_grid = 4 if cap <= (64 << 20) else 2
    return block_budget, vmem_limit, min_grid


def _sublane_align(dtype):
    # 8 rows for f32, 16 for bf16/f16, 32 for int8/fp8 (sublane packing).
    return max(8, 32 // jnp.dtype(dtype).itemsize)


def _eff_itemsize(dtype):
    # Size blocks in terms of the promoted f32 compute dtype so in-kernel
    # upcast temporaries are covered by the VMEM budget (matters on v7x).
    return max(jnp.dtype(dtype).itemsize, 4)


def _pick_block(n, bytes_per_unit, budget, align, min_grid=1):
    """Largest block along a size-`n` axis: a multiple of `align` (or the full
    axis) fitting `budget`, keeping >= min_grid grid steps when the axis is
    large enough.  Ragged tails are left to pl.cdiv grids + Pallas boundary
    masking (no wrapper-side padding)."""
    bytes_per_unit = max(int(bytes_per_unit), 1)
    if n <= align:
        return n
    if n * bytes_per_unit <= budget and n < align * min_grid:
        return n                                   # single full block
    max_b = min(n, max(1, budget // bytes_per_unit))
    if n >= align * min_grid and min_grid > 1:
        max_b = min(max_b, n // min_grid)          # spread over the cores
    return max(align, (max_b // align) * align)


def _compiler_params(vmem_limit, semantics):
    return pltpu.CompilerParams(
        dimension_semantics=tuple(semantics),
        vmem_limit_bytes=int(vmem_limit),
    )


def _block_diag_ones(cols):
    """128x128 f32 matrix with B[i, j] = 1 iff i//cols == j//cols."""
    idx = jnp.arange(128, dtype=jnp.int32)
    return ((idx[:, None] // cols) == (idx[None, :] // cols)).astype(jnp.float32)


# --------------------------------------------------------------------------
# pallas_call wrappers
# --------------------------------------------------------------------------
def _call_wide(x2d, block_rows, vmem_limit):
    rows, cols = x2d.shape
    return pl.pallas_call(
        _rowwise_softmax_kernel,
        out_shape=jax.ShapeDtypeStruct(x2d.shape, x2d.dtype),
        grid=(pl.cdiv(rows, block_rows),),
        in_specs=[pl.BlockSpec((block_rows, cols), lambda i: (i, 0))],
        out_specs=pl.BlockSpec((block_rows, cols), lambda i: (i, 0)),
        compiler_params=_compiler_params(vmem_limit, ("parallel",)),
    )(x2d)


def _call_packed(xw, bmat, cols, block_rows, vmem_limit):
    rows = xw.shape[0]
    kern = functools.partial(_packed_softmax_kernel, cols=cols)
    return pl.pallas_call(
        kern,
        out_shape=jax.ShapeDtypeStruct(xw.shape, xw.dtype),
        grid=(pl.cdiv(rows, block_rows),),
        in_specs=[pl.BlockSpec((block_rows, 128), lambda i: (i, 0)),
                  pl.BlockSpec((128, 128), lambda i: (0, 0))],
        out_specs=pl.BlockSpec((block_rows, 128), lambda i: (i, 0)),
        compiler_params=_compiler_params(vmem_limit, ("parallel",)),
    )(xw, bmat)


def _call_middle(x3d, block_outer, block_inner, vmem_limit):
    outer, cols, inner = x3d.shape
    return pl.pallas_call(
        _middle_axis_softmax_kernel,
        out_shape=jax.ShapeDtypeStruct(x3d.shape, x3d.dtype),
        grid=(pl.cdiv(outer, block_outer), pl.cdiv(inner, block_inner)),
        in_specs=[pl.BlockSpec((block_outer, cols, block_inner),
                               lambda i, j: (i, 0, j))],
        out_specs=pl.BlockSpec((block_outer, cols, block_inner),
                               lambda i, j: (i, 0, j)),
        compiler_params=_compiler_params(vmem_limit, ("parallel", "parallel")),
    )(x3d)


def _softmax_two_pass(x2d, budget, vmem_limit, align):
    """Last-axis softmax for rows too long to keep whole in VMEM."""
    rows, cols = x2d.shape
    eff = _eff_itemsize(x2d.dtype)
    bc = max(128, (min(cols, budget // (align * eff)) // 128) * 128)
    bc = min(bc, max(cols, 128))
    br = max(align, (min(rows, max(1, budget // (bc * eff))) // align) * align)
    masked = (cols % bc) != 0

    stats = functools.partial(_stats_kernel, block_cols=bc, total_cols=cols,
                              masked=masked)
    m, l = pl.pallas_call(
        stats,
        out_shape=(jax.ShapeDtypeStruct((rows, 1), jnp.float32),
                   jax.ShapeDtypeStruct((rows, 1), jnp.float32)),
        grid=(pl.cdiv(rows, br), pl.cdiv(cols, bc)),
        in_specs=[pl.BlockSpec((br, bc), lambda i, j: (i, j))],
        out_specs=(pl.BlockSpec((br, 1), lambda i, j: (i, 0)),
                   pl.BlockSpec((br, 1), lambda i, j: (i, 0))),
        compiler_params=_compiler_params(vmem_limit, ("parallel", "arbitrary")),
    )(x2d)

    return pl.pallas_call(
        _normalize_kernel,
        out_shape=jax.ShapeDtypeStruct(x2d.shape, x2d.dtype),
        grid=(pl.cdiv(rows, br), pl.cdiv(cols, bc)),
        in_specs=[pl.BlockSpec((br, bc), lambda i, j: (i, j)),
                  pl.BlockSpec((br, 1), lambda i, j: (i, 0)),
                  pl.BlockSpec((br, 1), lambda i, j: (i, 0))],
        out_specs=pl.BlockSpec((br, bc), lambda i, j: (i, j)),
        compiler_params=_compiler_params(vmem_limit, ("parallel", "parallel")),
    )(x2d, m, l)


def _softmax_last_axis(x2d, budget, vmem_limit, min_grid):
    rows, cols = x2d.shape
    eff = _eff_itemsize(x2d.dtype)
    align = _sublane_align(x2d.dtype)

    if 0 < cols < 128 and 128 % cols == 0:
        # Lane-packed path: `pack` consecutive rows share one 128-lane vreg row
        # via a free row-major reshape; loads, compute and stores stay lane-dense.
        pack = 128 // cols
        pad = (-rows) % pack
        if pad:  # tiny (<= pack-1 rows) pad so lane groups never span the reshape
            x2d = jnp.pad(x2d, ((0, pad), (0, 0)))
        rp = (rows + pad) // pack
        xw = x2d.reshape(rp, 128)
        block = _pick_block(rp, 128 * eff, budget, align, min_grid)
        bmat = _block_diag_ones(cols)
        ow = _call_packed(xw, bmat, cols, block, vmem_limit)
        out = ow.reshape(rp * pack, cols)
        return out[:rows] if pad else out

    if cols * align * eff > budget:
        # Rows too long for a single-tile pass: two-pass online max/sum.
        return _softmax_two_pass(x2d, budget, vmem_limit, align)

    block = _pick_block(rows, cols * eff, budget, align, min_grid)
    return _call_wide(x2d, block, vmem_limit)


def _softmax_middle(x3d, budget, vmem_limit, min_grid):
    """Transpose-free softmax over axis=1 of (outer, cols, inner); returns None
    only when a (cols, 128) slab cannot fit the block budget."""
    outer, cols, inner = x3d.shape
    eff = _eff_itemsize(x3d.dtype)
    lane_unit = 128 if inner >= 128 else inner
    if cols * lane_unit * eff > budget:
        return None
    slab = cols * inner * eff
    if slab <= budget:
        bi = inner
        bo = _pick_block(outer, slab, budget, 1, min_grid)
    else:
        bi = min(inner, max(128, ((budget // (cols * eff)) // 128) * 128))
        bo = 1
    return _call_middle(x3d, bo, bi, vmem_limit)


@functools.partial(jax.jit, static_argnames=("dim",))
def _pallas_softmax(x, dim):
    shape = x.shape
    cols = shape[dim]
    outer = math.prod(shape[:dim])
    inner = math.prod(shape[dim + 1:])
    budget, vmem_limit, min_grid = _tpu_caps()

    if inner == 1:
        out = _softmax_last_axis(x.reshape(outer, cols), budget, vmem_limit,
                                 min_grid)
        return out.reshape(shape)

    out = _softmax_middle(x.reshape(outer, cols, inner), budget, vmem_limit,
                          min_grid)
    if out is not None:
        return out.reshape(shape)

    # Pathological fallback: the softmax axis is so large that even a
    # (cols, 128) slab exceeds the block budget.  Move it last and use the
    # (VMEM-safe) last-axis / two-pass path.
    # TODO(synk): a cols-tiled online variant of the middle-axis kernel would
    # avoid this transpose round trip.
    perm = tuple(a for a in range(len(shape)) if a != dim) + (dim,)
    inv_perm = tuple(perm.index(a) for a in range(len(shape)))
    xt = jnp.transpose(x, perm)
    out2d = _softmax_last_axis(xt.reshape(outer * inner, cols), budget,
                               vmem_limit, min_grid)
    return jnp.transpose(out2d.reshape(xt.shape), inv_perm)


# --------------------------------------------------------------------------
# Module wrapper
# --------------------------------------------------------------------------
def _legacy_softmax_dim(ndim):
    # Mirrors torch.nn.functional._get_softmax_dim for dim=None.
    return 0 if ndim in (0, 1, 3) else 1


class Attend:
    """JAX/Pallas equivalent of the PyTorch `Attend` module: softmax(x, dim)."""

    def __init__(self, dim=None):
        self.dim = dim

    def __call__(self, x):
        ndim = x.ndim
        if ndim == 0:
            return jnp.ones_like(x)
        dim = self.dim
        if dim is None:
            dim = _legacy_softmax_dim(ndim)
        dim = dim % ndim
        return _pallas_softmax(x, dim=dim)


if __name__ == "__main__":
    budget, vmem_limit, min_grid = _tpu_caps()

    # 1) Attention-score-like tensor: lane-packed path (cols=16).
    x = jax.random.normal(jax.random.PRNGKey(0), (2, 4, 16, 16), jnp.float32)
    out = jax.block_until_ready(Attend(dim=-1)(x))
    assert out.shape == x.shape and out.dtype == x.dtype
    assert jnp.allclose(out, jax.nn.softmax(x, axis=-1), atol=1e-5, rtol=1e-5)
    assert jnp.allclose(jnp.sum(out, axis=-1), 1.0, atol=1e-5)

    # 2) Wide path (softmax axis spans full 128 lanes).
    x2 = jax.random.normal(jax.random.PRNGKey(1), (2, 4, 8, 128), jnp.float32)
    out2 = jax.block_until_ready(Attend(dim=-1)(x2))
    assert jnp.allclose(out2, jax.nn.softmax(x2, axis=-1), atol=1e-5, rtol=1e-5)

    # 3) Transpose-free middle-axis path (softmax over a non-last dim).
    x3 = jax.random.normal(jax.random.PRNGKey(2), (2, 4, 16, 16), jnp.float32)
    out3 = jax.block_until_ready(Attend(dim=1)(x3))
    assert jnp.allclose(out3, jax.nn.softmax(x3, axis=1), atol=1e-5, rtol=1e-5)

    # 4) Ragged rows (boundary blocks via cdiv grid, no jnp.pad round trip).
    x4 = jax.random.normal(jax.random.PRNGKey(3), (2, 50, 128), jnp.float32)
    out4 = jax.block_until_ready(Attend(dim=-1)(x4))
    assert jnp.allclose(out4, jax.nn.softmax(x4, axis=-1), atol=1e-5, rtol=1e-5)

    # 5) Packed path with a ragged row count (tiny pack pad).
    x5 = jax.random.normal(jax.random.PRNGKey(4), (2, 37, 16), jnp.float32)
    out5 = jax.block_until_ready(Attend(dim=-1)(x5))
    assert jnp.allclose(out5, jax.nn.softmax(x5, axis=-1), atol=1e-5, rtol=1e-5)

    # 6) bf16 input (dtype-aware sublane alignment / promoted-dtype budget).
    x6 = jax.random.normal(jax.random.PRNGKey(5), (4, 64, 256), jnp.bfloat16)
    out6 = jax.block_until_ready(Attend(dim=-1)(x6))
    ref6 = jax.nn.softmax(x6.astype(jnp.float32), axis=-1).astype(jnp.bfloat16)
    assert out6.dtype == jnp.bfloat16
    assert jnp.allclose(out6.astype(jnp.float32), ref6.astype(jnp.float32),
                        atol=1e-2)

    # 7) Two-pass (huge-cols) path, exercised directly with a tiny forced budget.
    x7 = jax.random.normal(jax.random.PRNGKey(6), (64, 300), jnp.float32)
    out7 = jax.block_until_ready(
        _softmax_two_pass(x7, 64 << 10, vmem_limit, _sublane_align(x7.dtype)))
    assert jnp.allclose(out7, jax.nn.softmax(x7, axis=-1), atol=1e-5, rtol=1e-5)

    # 8) Middle-axis path with inner tiling, exercised with a tiny forced budget.
    x8 = jax.random.normal(jax.random.PRNGKey(7), (8, 4, 384), jnp.float32)
    out8 = jax.block_until_ready(_softmax_middle(x8, 4 << 10, vmem_limit, min_grid))
    assert out8 is not None
    assert jnp.allclose(out8, jax.nn.softmax(x8, axis=1), atol=1e-5, rtol=1e-5)

    print("KERNEL_OK")
</pallas_src>

<mosaic_0001>
module attributes {stable_mosaic.version = 11 : i64} {
  func.func @_packed_softmax_kernel(%arg0: i32, %arg1: memref<16x128xf32, #tpu.memory_space<vmem>>, %arg2: memref<128x128xf32, #tpu.memory_space<vmem>>, %arg3: memref<16x128xf32, #tpu.memory_space<vmem>>) attributes {dimension_semantics = [#tpu.dimension_semantics<parallel>], iteration_bounds = array<i64: 1>, scalar_prefetch = 0 : i64, scratch_operands = 0 : i64, tpu.core_type = #tpu.core_type<tc>, window_params = [{transform_indices = @transform_0, window_bounds = array<i64: 16, 128>}, {pipeline_mode = #tpu.pipeline_mode<synchronous>, transform_indices = @transform_1, window_bounds = array<i64: 128, 128>}, {transform_indices = @transform_2, window_bounds = array<i64: 16, 128>}]} {
    %c0 = arith.constant 0 : index
    %c0_0 = arith.constant 0 : index
    %0 = vector.load %arg1[%c0, %c0_0] : memref<16x128xf32, #tpu.memory_space<vmem>>, vector<16x128xf32>
    %1 = tpu.iota {dimensions = array<i32: 1>} : vector<1x128xi32>
    %c1_i32 = arith.constant 1 : i32
    %2 = tpu.dynamic_rotate %1 by %c1_i32 dim 1 : vector<1x128xi32>, i32 -> vector<1x128xi32>
    %c1_i32_1 = arith.constant 1 : i32
    %3 = vector.broadcast %c1_i32_1 : i32 to vector<1x128xi32>
    %4 = arith.xori %1, %3 : vector<1x128xi32>
    %5 = arith.cmpi eq, %2, %4 : vector<1x128xi32>
    %c1_i32_2 = arith.constant 1 : i32
    %6 = tpu.dynamic_rotate %0 by %c1_i32_2 dim 1 : vector<16x128xf32>, i32 -> vector<16x128xf32>
    %c127_i32 = arith.constant 127 : i32
    %7 = tpu.dynamic_rotate %0 by %c127_i32 dim 1 : vector<16x128xf32>, i32 -> vector<16x128xf32>
    %8 = vector.shape_cast %5 : vector<1x128xi1> to vector<1x128xi1>
    %9 = vector.broadcast %8 : vector<1x128xi1> to vector<16x128xi1>
    %10 = arith.select %9, %6, %7 : vector<16x128xi1>, vector<16x128xf32>
    %11 = arith.maximumf %0, %10 : vector<16x128xf32>
    %c2_i32 = arith.constant 2 : i32
    %12 = tpu.dynamic_rotate %1 by %c2_i32 dim 1 : vector<1x128xi32>, i32 -> vector<1x128xi32>
    %c2_i32_3 = arith.constant 2 : i32
    %13 = vector.broadcast %c2_i32_3 : i32 to vector<1x128xi32>
    %14 = arith.xori %1, %13 : vector<1x128xi32>
    %15 = arith.cmpi eq, %12, %14 : vector<1x128xi32>
    %c2_i32_4 = arith.constant 2 : i32
    %16 = tpu.dynamic_rotate %11 by %c2_i32_4 dim 1 : vector<16x128xf32>, i32 -> vector<16x128xf32>
    %c126_i32 = arith.constant 126 : i32
    %17 = tpu.dynamic_rotate %11 by %c126_i32 dim 1 : vector<16x128xf32>, i32 -> vector<16x128xf32>
    %18 = vector.shape_cast %15 : vector<1x128xi1> to vector<1x128xi1>
    %19 = vector.broadcast %18 : vector<1x128xi1> to vector<16x128xi1>
    %20 = arith.select %19, %16, %17 : vector<16x128xi1>, vector<16x128xf32>
    %21 = arith.maximumf %11, %20 : vector<16x128xf32>
    %c4_i32 = arith.constant 4 : i32
    %22 = tpu.dynamic_rotate %1 by %c4_i32 dim 1 : vector<1x128xi32>, i32 -> vector<1x128xi32>
    %c4_i32_5 = arith.constant 4 : i32
    %23 = vector.broadcast %c4_i32_5 : i32 to vector<1x128xi32>
    %24 = arith.xori %1, %23 : vector<1x128xi32>
    %25 = arith.cmpi eq, %22, %24 : vector<1x128xi32>
    %c4_i32_6 = arith.constant 4 : i32
    %26 = tpu.dynamic_rotate %21 by %c4_i32_6 dim 1 : vector<16x128xf32>, i32 -> vector<16x128xf32>
    %c124_i32 = arith.constant 124 : i32
    %27 = tpu.dynamic_rotate %21 by %c124_i32 dim 1 : vector<16x128xf32>, i32 -> vector<16x128xf32>
    %28 = vector.shape_cast %25 : vector<1x128xi1> to vector<1x128xi1>
    %29 = vector.broadcast %28 : vector<1x128xi1> to vector<16x128xi1>
    %30 = arith.select %29, %26, %27 : vector<16x128xi1>, vector<16x128xf32>
    %31 = arith.maximumf %21, %30 : vector<16x128xf32>
    %c8_i32 = arith.constant 8 : i32
    %32 = tpu.dynamic_rotate %1 by %c8_i32 dim 1 : vector<1x128xi32>, i32 -> vector<1x128xi32>
    %c8_i32_7 = arith.constant 8 : i32
    %33 = vector.broadcast %c8_i32_7 : i32 to vector<1x128xi32>
    %34 = arith.xori %1, %33 : vector<1x128xi32>
    %35 = arith.cmpi eq, %32, %34 : vector<1x128xi32>
    %c8_i32_8 = arith.constant 8 : i32
    %36 = tpu.dynamic_rotate %31 by %c8_i32_8 dim 1 : vector<16x128xf32>, i32 -> vector<16x128xf32>
    %c120_i32 = arith.constant 120 : i32
    %37 = tpu.dynamic_rotate %31 by %c120_i32 dim 1 : vector<16x128xf32>, i32 -> vector<16x128xf32>
    %38 = vector.shape_cast %35 : vector<1x128xi1> to vector<1x128xi1>
    %39 = vector.broadcast %38 : vector<1x128xi1> to vector<16x128xi1>
    %40 = arith.select %39, %36, %37 : vector<16x128xi1>, vector<16x128xf32>
    %41 = arith.maximumf %31, %40 : vector<16x128xf32>
    %42 = arith.subf %0, %41 : vector<16x128xf32>
    %43 = math.exp %42 : vector<16x128xf32>
    %c0_9 = arith.constant 0 : index
    %c0_10 = arith.constant 0 : index
    %44 = vector.load %arg2[%c0_9, %c0_10] : memref<128x128xf32, #tpu.memory_space<vmem>>, vector<128x128xf32>
    %cst = arith.constant dense<0.000000e+00> : vector<16x128xf32>
    %45 = tpu.matmul %43, %44, %cst {dimension_numbers = #tpu.dot_dimension_numbers<[1], [0], [0], [1], [0, 0, 1, 1], [], []>, precision = #tpu.contract_precision<fp32>} : vector<16x128xf32>, vector<128x128xf32>, vector<16x128xf32> -> vector<16x128xf32>
    %46 = arith.divf %43, %45 : vector<16x128xf32>
    %c0_11 = arith.constant 0 : index
    %c0_12 = arith.constant 0 : index
    %47 = vector.load %arg3[%c0_11, %c0_12] : memref<16x128xf32, #tpu.memory_space<vmem>>, vector<16x128xf32>
    tpu.vector_store %arg3[%c0_11, %c0_12], %46 {strides = array<i32>} : memref<16x128xf32, #tpu.memory_space<vmem>>, vector<16x128xf32>,
    return
  }
  func.func @transform_0(%arg0: i32) -> (i32, i32) {
    %c0_i32 = arith.constant 0 : i32
    %c0_i32_0 = arith.constant 0 : i32
    return %arg0, %c0_i32 : i32, i32
  }
  func.func @transform_1(%arg0: i32) -> (i32, i32) {
    %c0_i32 = arith.constant 0 : i32
    %c0_i32_0 = arith.constant 0 : i32
    %c0_i32_1 = arith.constant 0 : i32
    return %c0_i32, %c0_i32_0 : i32, i32
  }
  func.func @transform_2(%arg0: i32) -> (i32, i32) {
    %c0_i32 = arith.constant 0 : i32
    %c0_i32_0 = arith.constant 0 : i32
    return %arg0, %c0_i32 : i32, i32
  }
}

</mosaic_0001>

<llo_original>
// kernel: _pallas_softmax.1
$region0: #{_pallas_softmax.1}
  #allocation0 [shape = 'u32[]', space=smem, size = 0x4, offset = 0x4, fixed_abs, tag = 'smem constant byte address 0x4 - core index']
  #allocation1 [shape = 'u32[144,128]{1,0:T(1,128)}', space=vmem, size = 0x12000, scoped, tag = 'internal scratch']
  %s0 = inlined_call_operand.vmem [shape: f32[16,128], index: 0, kind: input, shape index: {}]
  %s1 = inlined_call_operand.vmem [shape: f32[128,128], index: 1, kind: input, shape index: {}]
  %s2 = inlined_call_operand.vmem [shape: f32[16,128], index: 2, kind: output, shape index: {}]
  %s3 = sld [smem:[#allocation0]]
  $region18: #{_pallas_softmax.1} parent=0
    _
  %s5 = ssub.s32 1, %s3
  %s6 = scalar_select 0, %s5, %s3
  // Predicated region
  $region2: #{_pallas_softmax.1} parent=0 // pred_check
    _
  $region3: #{_pallas_softmax.1} parent=0 // pred_check_branch
    %8 = sbr.rel (0) target = $region5
  $region4: #{_pallas_softmax.1} parent=0 // pred_region
    _
  $region5: #{_pallas_softmax.1} parent=0 // pred_fallthru
    _
  // Predicated region
  $region6: #{_pallas_softmax.1} parent=0 // pred_check
    _
  $region7: #{_pallas_softmax.1} parent=0 // pred_check_branch
    %10 = sbr.rel (0) target = $region9
  $region8: #{_pallas_softmax.1} parent=0 // pred_region
    _
  $region9: #{_pallas_softmax.1} parent=0 // pred_fallthru
    _
  %v11 = vld [vmem:[%s0] sm:$0xff]
  %v12 = vld [vmem:[%s0 + $0x8] sm:$0xff]
  %v13 = vlaneseq
  %v14 = vand.u32 %v13, 127
  %15 = vrot.lane.b32.xlu0 %v14, 1
  %v16 = vpop.permute.xlu0 %15
  %v17 = vxor.u32 %v14, 1
  %vm18 = vcmp.eq.s32.totalorder %v16, %v17
  %19 = vrot.lane.b32.xlu0 %v11, 1
  %v20 = vpop.permute.xlu0 %19
  %21 = vrot.lane.b32.xlu0 %v12, 1
  %v22 = vpop.permute.xlu0 %21
  %23 = vrot.lane.b32.xlu0 %v11, 127
  %v24 = vpop.permute.xlu0 %23
  %25 = vrot.lane.b32.xlu0 %v12, 127
  %v26 = vpop.permute.xlu0 %25
  %v27 = vsel %vm18, 1, 0
  %v28 = vlaneseq
  %v29 = vshrl.u32 %v28, 7
  %v30 = vsub.s32 0, %v29
  %v31 = vrot.slane %v27, %v30
  %vm32 = vcmp.eq.s32.totalorder %v31, 1
  %v33 = vsel %vm32, %v20, %v24
  %v34 = vsel %vm32, %v22, %v26
  %v35 = vmax.f32 %v11, %v33
  %v36 = vmax.f32 %v12, %v34
  %37 = vrot.lane.b32.xlu0 %v14, 2
  %v38 = vpop.permute.xlu0 %37
  %v39 = vxor.u32 %v14, 2
  %vm40 = vcmp.eq.s32.totalorder %v38, %v39
  %41 = vrot.lane.b32.xlu0 %v35, 2
  %v42 = vpop.permute.xlu0 %41
  %43 = vrot.lane.b32.xlu0 %v36, 2
  %v44 = vpop.permute.xlu0 %43
  %45 = vrot.lane.b32.xlu0 %v35, 126
  %v46 = vpop.permute.xlu0 %45
  %47 = vrot.lane.b32.xlu0 %v36, 126
  %v48 = vpop.permute.xlu0 %47
  %v49 = vsel %vm40, 1, 0
  %v50 = vlaneseq
  %v51 = vshrl.u32 %v50, 7
  %v52 = vsub.s32 0, %v51
  %v53 = vrot.slane %v49, %v52
  %vm54 = vcmp.eq.s32.totalorder %v53, 1
  %v55 = vsel %vm54, %v42, %v46
  %v56 = vsel %vm54, %v44, %v48
  %v57 = vmax.f32 %v35, %v55
  %v58 = vmax.f32 %v36, %v56
  %59 = vrot.lane.b32.xlu0 %v14, 4
  %v60 = vpop.permute.xlu0 %59
  %v61 = vxor.u32 %v14, 4
  %vm62 = vcmp.eq.s32.totalorder %v60, %v61
  %63 = vrot.lane.b32.xlu0 %v57, 4
  %v64 = vpop.permute.xlu0 %63
  %65 = vrot.lane.b32.xlu0 %v58, 4
  %v66 = vpop.permute.xlu0 %65
  %67 = vrot.lane.b32.xlu0 %v57, 124
  %v68 = vpop.permute.xlu0 %67
  %69 = vrot.lane.b32.xlu0 %v58, 124
  %v70 = vpop.permute.xlu0 %69
  %v71 = vsel %vm62, 1, 0
  %v72 = vlaneseq
  %v73 = vshrl.u32 %v72, 7
  %v74 = vsub.s32 0, %v73
  %v75 = vrot.slane %v71, %v74
  %vm76 = vcmp.eq.s32.totalorder %v75, 1
  %v77 = vsel %vm76, %v64, %v68
  %v78 = vsel %vm76, %v66, %v70
  %v79 = vmax.f32 %v57, %v77
  %v80 = vmax.f32 %v58, %v78
  %81 = vrot.lane.b32.xlu0 %v14, 8
  %v82 = vpop.permute.xlu0 %81
  %v83 = vxor.u32 %v14, 8
  %vm84 = vcmp.eq.s32.totalorder %v82, %v83
  %85 = vrot.lane.b32.xlu0 %v79, 8
  %v86 = vpop.permute.xlu0 %85
  %87 = vrot.lane.b32.xlu0 %v80, 8
  %v88 = vpop.permute.xlu0 %87
  %89 = vrot.lane.b32.xlu0 %v79, 120
  %v90 = vpop.permute.xlu0 %89
  %91 = vrot.lane.b32.xlu0 %v80, 120
  %v92 = vpop.permute.xlu0 %91
  %v93 = vsel %vm84, 1, 0
  %v94 = vlaneseq
  %v95 = vshrl.u32 %v94, 7
  %v96 = vsub.s32 0, %v95
  %v97 = vrot.slane %v93, %v96
  %vm98 = vcmp.eq.s32.totalorder %v97, 1
  %v99 = vsel %vm98, %v86, %v90
  %v100 = vsel %vm98, %v88, %v92
  %v101 = vmax.f32 %v79, %v99
  %v102 = vmax.f32 %v80, %v100
  %v103 = vsub.f32 %v11, %v101
  %v104 = vsub.f32 %v12, %v102
  %v105 = vmul.f32 %v103, 1.442695
  %v106 = vpow.pop %v105
  %v107 = vmul.f32 %v104, 1.442695
  %v108 = vpow.pop %v107
  %v109 = vld [vmem:[%s1] sm:$0xff]
  %v110 = vld [vmem:[%s1 + $0x8] sm:$0xff]
  %v111 = vld [vmem:[%s1 + $0x10] sm:$0xff]
  %v112 = vld [vmem:[%s1 + $0x18] sm:$0xff]
  %v113 = vld [vmem:[%s1 + $0x20] sm:$0xff]
  %v114 = vld [vmem:[%s1 + $0x28] sm:$0xff]
  %v115 = vld [vmem:[%s1 + $0x30] sm:$0xff]
  %v116 = vld [vmem:[%s1 + $0x38] sm:$0xff]
  %v117 = vld [vmem:[%s1 + $0x40] sm:$0xff]
  %v118 = vld [vmem:[%s1 + $0x48] sm:$0xff]
  %v119 = vld [vmem:[%s1 + $0x50] sm:$0xff]
  %v120 = vld [vmem:[%s1 + $0x58] sm:$0xff]
  %v121 = vld [vmem:[%s1 + $0x60] sm:$0xff]
  %v122 = vld [vmem:[%s1 + $0x68] sm:$0xff]
  %v123 = vld [vmem:[%s1 + $0x70] sm:$0xff]
  %v124 = vld [vmem:[%s1 + $0x78] sm:$0xff]
  %125 = vmatprep.subr.mxu0 0.0
  %v126 = vand.u32 %v109, 4294901760
  %127 = vmatpush1.msra.mxu0 %v126
  %128 = vmatprep.subr.mxu0 0.0
  %v129 = vand.u32 %v110, 4294901760
  %130 = vmatpush1.msra.mxu0 %v129
  %131 = vmatprep.subr.mxu0 0.0
  %v132 = vand.u32 %v111, 4294901760
  %133 = vmatpush1.msra.mxu0 %v132
  %134 = vmatprep.subr.mxu0 0.0
  %v135 = vand.u32 %v112, 4294901760
  %136 = vmatpush1.msra.mxu0 %v135
  %137 = vmatprep.subr.mxu0 0.0
  %v138 = vand.u32 %v113, 4294901760
  %139 = vmatpush1.msra.mxu0 %v138
  %140 = vmatprep.subr.mxu0 0.0
  %v141 = vand.u32 %v114, 4294901760
  %142 = vmatpush1.msra.mxu0 %v141
  %143 = vmatprep.subr.mxu0 0.0
  %v144 = vand.u32 %v115, 4294901760
  %145 = vmatpush1.msra.mxu0 %v144
  %146 = vmatprep.subr.mxu0 0.0
  %v147 = vand.u32 %v116, 4294901760
  %148 = vmatpush1.msra.mxu0 %v147
  %149 = vmatprep.subr.mxu0 0.0
  %v150 = vand.u32 %v117, 4294901760
  %151 = vmatpush1.msra.mxu0 %v150
  %152 = vmatprep.subr.mxu0 0.0
  %v153 = vand.u32 %v118, 4294901760
  %154 = vmatpush1.msra.mxu0 %v153
  %155 = vmatprep.subr.mxu0 0.0
  %v156 = vand.u32 %v119, 4294901760
  %157 = vmatpush1.msra.mxu0 %v156
  %158 = vmatprep.subr.mxu0 0.0
  %v159 = vand.u32 %v120, 4294901760
  %160 = vmatpush1.msra.mxu0 %v159
  %161 = vmatprep.subr.mxu0 0.0
  %v162 = vand.u32 %v121, 4294901760
  %163 = vmatpush1.msra.mxu0 %v162
  %164 = vmatprep.subr.mxu0 0.0
  %v165 = vand.u32 %v122, 4294901760
  %166 = vmatpush1.msra.mxu0 %v165
  %167 = vmatprep.subr.mxu0 0.0
  %v168 = vand.u32 %v123, 4294901760
  %169 = vmatpush1.msra.mxu0 %v168
  %170 = vmatprep.subr.mxu0 0.0
  %v171 = vand.u32 %v124, 4294901760
  %172 = vmatpush1.msra.mxu0 %v171
  %173 = vmatprep.subr.mxu0 0.0
  %174 = vmatpush1.msra.mxu0 0.0
  %175 = vmatprep.subr.mxu0 0.0
  %176 = vmatpush1.msra.mxu0 0.0
  %177 = vmatprep.subr.mxu0 0.0
  %178 = vmatpush1.msra.mxu0 0.0
  %179 = vmatprep.subr.mxu0 0.0
  %180 = vmatpush1.msra.mxu0 0.0
  %181 = vmatprep.subr.mxu0 0.0
  %182 = vmatpush1.msra.mxu0 0.0
  %183 = vmatprep.subr.mxu0 0.0
  %184 = vmatpush1.msra.mxu0 0.0
  %185 = vmatprep.subr.mxu0 0.0
  %186 = vmatpush1.msra.mxu0 0.0
  %187 = vmatprep.subr.mxu0 0.0
  %188 = vmatpush1.msra.mxu0 0.0
  %189 = vmatprep.subr.mxu0 0.0
  %190 = vmatpush1.msra.mxu0 0.0
  %191 = vmatprep.subr.mxu0 0.0
  %192 = vmatpush1.msra.mxu0 0.0
  %193 = vmatprep.subr.mxu0 0.0
  %194 = vmatpush1.msra.mxu0 0.0
  %195 = vmatprep.subr.mxu0 0.0
  %196 = vmatpush1.msra.mxu0 0.0
  %197 = vmatprep.subr.mxu0 0.0
  %198 = vmatpush1.msra.mxu0 0.0
  %199 = vmatprep.subr.mxu0 0.0
  %200 = vmatpush1.msra.mxu0 0.0
  %201 = vmatprep.subr.mxu0 0.0
  %202 = vmatpush1.msra.mxu0 0.0
  %203 = vmatprep.subr.mxu0 0.0
  %204 = vmatpush1.msra.mxu0 0.0
  %205 = vmatprep.mubr.f32.mxu0 0.0
  %v206 = vand.u32 %v106, 4294901760
  %v207 = vsub.f32 %v106, %v206
  %v208 = vand.u32 %v207, 4294901760
  %v209 = vsub.f32 %v207, %v208
  %v210 = vand.u32 %v209, 4294901760
  %211 = vmatmul.mubr.f32.gmra.mrb[0].mxu0 %v210
  %v212 = vpop.f32.mrb[0].mxu0
  %v213 = vadd.f32 0.0, %v212
  %v214 = vpop.f32.mrb[0].mxu0
  %215 = vmatprep.mubr.f32.mxu0 0.0
  %v216 = vand.u32 %v108, 4294901760
  %v217 = vsub.f32 %v108, %v216
  %v218 = vand.u32 %v217, 4294901760
  %v219 = vsub.f32 %v217, %v218
  %v220 = vand.u32 %v219, 4294901760
  %221 = vmatmul.mubr.f32.gmra.mrb[0].mxu0 %v220
  %v222 = vpop.f32.mrb[0].mxu0
  %v223 = vadd.f32 0.0, %v222
  %v224 = vpop.f32.mrb[0].mxu0
  %225 = vdwg.mxu0
  %226 = vmatprep.subr.mxu0 0.0
  %v227 = vand.u32 %v109, 4294901760
  %v228 = vsub.f32 %v109, %v227
  %v229 = vand.u32 %v228, 4294901760
  %v230 = vsub.f32 %v228, %v229
  %v231 = vand.u32 %v230, 4294901760
  %232 = vmatpush1.msra.mxu0 %v231
  %233 = vmatprep.subr.mxu0 0.0
  %v234 = vand.u32 %v110, 4294901760
  %v235 = vsub.f32 %v110, %v234
  %v236 = vand.u32 %v235, 4294901760
  %v237 = vsub.f32 %v235, %v236
  %v238 = vand.u32 %v237, 4294901760
  %239 = vmatpush1.msra.mxu0 %v238
  %240 = vmatprep.subr.mxu0 0.0
  %v241 = vand.u32 %v111, 4294901760
  %v242 = vsub.f32 %v111, %v241
  %v243 = vand.u32 %v242, 4294901760
  %v244 = vsub.f32 %v242, %v243
  %v245 = vand.u32 %v244, 4294901760
  %246 = vmatpush1.msra.mxu0 %v245
  %247 = vmatprep.subr.mxu0 0.0
  %v248 = vand.u32 %v112, 4294901760
  %v249 = vsub.f32 %v112, %v248
  %v250 = vand.u32 %v249, 4294901760
  %v251 = vsub.f32 %v249, %v250
  %v252 = vand.u32 %v251, 4294901760
  %253 = vmatpush1.msra.mxu0 %v252
  %254 = vmatprep.subr.mxu0 0.0
  %v255 = vand.u32 %v113, 4294901760
  %v256 = vsub.f32 %v113, %v255
  %v257 = vand.u32 %v256, 4294901760
  %v258 = vsub.f32 %v256, %v257
  %v259 = vand.u32 %v258, 4294901760
  %260 = vmatpush1.msra.mxu0 %v259
  %261 = vmatprep.subr.mxu0 0.0
  %v262 = vand.u32 %v114, 4294901760
  %v263 = vsub.f32 %v114, %v262
  %v264 = vand.u32 %v263, 4294901760
  %v265 = vsub.f32 %v263, %v264
  %v266 = vand.u32 %v265, 4294901760
  %267 = vmatpush1.msra.mxu0 %v266
  %268 = vmatprep.subr.mxu0 0.0
  %v269 = vand.u32 %v115, 4294901760
  %v270 = vsub.f32 %v115, %v269
  %v271 = vand.u32 %v270, 4294901760
  %v272 = vsub.f32 %v270, %v271
  %v273 = vand.u32 %v272, 4294901760
  %274 = vmatpush1.msra.mxu0 %v273
  %275 = vmatprep.subr.mxu0 0.0
  %v276 = vand.u32 %v116, 4294901760
  %v277 = vsub.f32 %v116, %v276
  %v278 = vand.u32 %v277, 4294901760
  %v279 = vsub.f32 %v277, %v278
  %v280 = vand.u32 %v279, 4294901760
  %281 = vmatpush1.msra.mxu0 %v280
  %282 = vmatprep.subr.mxu0 0.0
  %v283 = vand.u32 %v117, 4294901760
  %v284 = vsub.f32 %v117, %v283
  %v285 = vand.u32 %v284, 4294901760
  %v286 = vsub.f32 %v284, %v285
  %v287 = vand.u32 %v286, 4294901760
  %288 = vmatpush1.msra.mxu0 %v287
  %289 = vmatprep.subr.mxu0 0.0
  %v290 = vand.u32 %v118, 4294901760
  %v291 = vsub.f32 %v118, %v290
  %v292 = vand.u32 %v291, 4294901760
  %v293 = vsub.f32 %v291, %v292
  %v294 = vand.u32 %v293, 4294901760
  %295 = vmatpush1.msra.mxu0 %v294
  %296 = vmatprep.subr.mxu0 0.0
  %v297 = vand.u32 %v119, 4294901760
  %v298 = vsub.f32 %v119, %v297
  %v299 = vand.u32 %v298, 4294901760
  %v300 = vsub.f32 %v298, %v299
  %v301 = vand.u32 %v300, 4294901760
  %302 = vmatpush1.msra.mxu0 %v301
  %303 = vmatprep.subr.mxu0 0.0
  %v304 = vand.u32 %v120, 4294901760
  %v305 = vsub.f32 %v120, %v304
  %v306 = vand.u32 %v305, 4294901760
  %v307 = vsub.f32 %v305, %v306
  %v308 = vand.u32 %v307, 4294901760
  %309 = vmatpush1.msra.mxu0 %v308
  %310 = vmatprep.subr.mxu0 0.0
  %v311 = vand.u32 %v121, 4294901760
  %v312 = vsub.f32 %v121, %v311
  %v313 = vand.u32 %v312, 4294901760
  %v314 = vsub.f32 %v312, %v313
  %v315 = vand.u32 %v314, 4294901760
  %316 = vmatpush1.msra.mxu0 %v315
  %317 = vmatprep.subr.mxu0 0.0
  %v318 = vand.u32 %v122, 4294901760
  %v319 = vsub.f32 %v122, %v318
  %v320 = vand.u32 %v319, 4294901760
  %v321 = vsub.f32 %v319, %v320
  %v322 = vand.u32 %v321, 4294901760
  %323 = vmatpush1.msra.mxu0 %v322
  %324 = vmatprep.subr.mxu0 0.0
  %v325 = vand.u32 %v123, 4294901760
  %v326 = vsub.f32 %v123, %v325
  %v327 = vand.u32 %v326, 4294901760
  %v328 = vsub.f32 %v326, %v327
  %v329 = vand.u32 %v328, 4294901760
  %330 = vmatpush1.msra.mxu0 %v329
  %331 = vmatprep.subr.mxu0 0.0
  %v332 = vand.u32 %v124, 4294901760
  %v333 = vsub.f32 %v124, %v332
  %v334 = vand.u32 %v333, 4294901760
  %v335 = vsub.f32 %v333, %v334
  %v336 = vand.u32 %v335, 4294901760
  %337 = vmatpush1.msra.mxu0 %v336
  %338 = vmatprep.subr.mxu0 0.0
  %339 = vmatpush1.msra.mxu0 0.0
  %340 = vmatprep.subr.mxu0 0.0
  %341 = vmatpush1.msra.mxu0 0.0
  %342 = vmatprep.subr.mxu0 0.0
  %343 = vmatpush1.msra.mxu0 0.0
  %344 = vmatprep.subr.mxu0 0.0
  %345 = vmatpush1.msra.mxu0 0.0
  %346 = vmatprep.subr.mxu0 0.0
  %347 = vmatpush1.msra.mxu0 0.0
  %348 = vmatprep.subr.mxu0 0.0
  %349 = vmatpush1.msra.mxu0 0.0
  %350 = vmatprep.subr.mxu0 0.0
  %351 = vmatpush1.msra.mxu0 0.0
  %352 = vmatprep.subr.mxu0 0.0
  %353 = vmatpush1.msra.mxu0 0.0
  %354 = vmatprep.subr.mxu0 0.0
  %355 = vmatpush1.msra.mxu0 0.0
  %356 = vmatprep.subr.mxu0 0.0
  %357 = vmatpush1.msra.mxu0 0.0
  %358 = vmatprep.subr.mxu0 0.0
  %359 = vmatpush1.msra.mxu0 0.0
  %360 = vmatprep.subr.mxu0 0.0
  %361 = vmatpush1.msra.mxu0 0.0
  %362 = vmatprep.subr.mxu0 0.0
  %363 = vmatpush1.msra.mxu0 0.0
  %364 = vmatprep.subr.mxu0 0.0
  %365 = vmatpush1.msra.mxu0 0.0
  %366 = vmatprep.subr.mxu0 0.0
  %367 = vmatpush1.msra.mxu0 0.0
  %368 = vmatprep.subr.mxu0 0.0
  %369 = vmatpush1.msra.mxu0 0.0
  %370 = vmatprep.mubr.f32.mxu0 0.0
  %v371 = vand.u32 %v106, 4294901760
  %372 = vmatmul.mubr.f32.gmra.mrb[0].mxu0 %v371
  %v373 = vpop.f32.mrb[0].mxu0
  %v374 = vadd.f32 %v213, %v373
  %v375 = vpop.f32.mrb[0].mxu0
  %376 = vmatprep.mubr.f32.mxu0 0.0
  %v377 = vand.u32 %v108, 4294901760
  %378 = vmatmul.mubr.f32.gmra.mrb[0].mxu0 %v377
  %v379 = vpop.f32.mrb[0].mxu0
  %v380 = vadd.f32 %v223, %v379
  %v381 = vpop.f32.mrb[0].mxu0
  %382 = vdwg.mxu0
  %383 = vmatprep.subr.mxu0 0.0
  %v384 = vand.u32 %v109, 4294901760
  %v385 = vsub.f32 %v109, %v384
  %386 = vmatpush1.msra.mxu0 %v385
  %387 = vmatprep.subr.mxu0 0.0
  %v388 = vand.u32 %v110, 4294901760
  %v389 = vsub.f32 %v110, %v388
  %390 = vmatpush1.msra.mxu0 %v389
  %391 = vmatprep.subr.mxu0 0.0
  %v392 = vand.u32 %v111, 4294901760
  %v393 = vsub.f32 %v111, %v392
  %394 = vmatpush1.msra.mxu0 %v393
  %395 = vmatprep.subr.mxu0 0.0
  %v396 = vand.u32 %v112, 4294901760
  %v397 = vsub.f32 %v112, %v396
  %398 = vmatpush1.msra.mxu0 %v397
  %399 = vmatprep.subr.mxu0 0.0
  %v400 = vand.u32 %v113, 4294901760
  %v401 = vsub.f32 %v113, %v400
  %402 = vmatpush1.msra.mxu0 %v401
  %403 = vmatprep.subr.mxu0 0.0
  %v404 = vand.u32 %v114, 4294901760
  %v405 = vsub.f32 %v114, %v404
  %406 = vmatpush1.msra.mxu0 %v405
  %407 = vmatprep.subr.mxu0 0.0
  %v408 = vand.u32 %v115, 4294901760
  %v409 = vsub.f32 %v115, %v408
  %410 = vmatpush1.msra.mxu0 %v409
  %411 = vmatprep.subr.mxu0 0.0
  %v412 = vand.u32 %v116, 4294901760
  %v413 = vsub.f32 %v116, %v412
  %414 = vmatpush1.msra.mxu0 %v413
  %415 = vmatprep.subr.mxu0 0.0
  %v416 = vand.u32 %v117, 4294901760
  %v417 = vsub.f32 %v117, %v416
  %418 = vmatpush1.msra.mxu0 %v417
  %419 = vmatprep.subr.mxu0 0.0
  %v420 = vand.u32 %v118, 4294901760
  %v421 = vsub.f32 %v118, %v420
  %422 = vmatpush1.msra.mxu0 %v421
  %423 = vmatprep.subr.mxu0 0.0
  %v424 = vand.u32 %v119, 4294901760
  %v425 = vsub.f32 %v119, %v424
  %426 = vmatpush1.msra.mxu0 %v425
  %427 = vmatprep.subr.mxu0 0.0
  %v428 = vand.u32 %v120, 4294901760
  %v429 = vsub.f32 %v120, %v428
  %430 = vmatpush1.msra.mxu0 %v429
  %431 = vmatprep.subr.mxu0 0.0
  %v432 = vand.u32 %v121, 4294901760
  %v433 = vsub.f32 %v121, %v432
  %434 = vmatpush1.msra.mxu0 %v433
  %435 = vmatprep.subr.mxu0 0.0
  %v436 = vand.u32 %v122, 4294901760
  %v437 = vsub.f32 %v122, %v436
  %438 = vmatpush1.msra.mxu0 %v437
  %439 = vmatprep.subr.mxu0 0.0
  %v440 = vand.u32 %v123, 4294901760
  %v441 = vsub.f32 %v123, %v440
  %442 = vmatpush1.msra.mxu0 %v441
  %443 = vmatprep.subr.mxu0 0.0
  %v444 = vand.u32 %v124, 4294901760
  %v445 = vsub.f32 %v124, %v444
  %446 = vmatpush1.msra.mxu0 %v445
  %447 = vmatprep.subr.mxu0 0.0
  %448 = vmatpush1.msra.mxu0 0.0
  %449 = vmatprep.subr.mxu0 0.0
  %450 = vmatpush1.msra.mxu0 0.0
  %451 = vmatprep.subr.mxu0 0.0
  %452 = vmatpush1.msra.mxu0 0.0
  %453 = vmatprep.subr.mxu0 0.0
  %454 = vmatpush1.msra.mxu0 0.0
  %455 = vmatprep.subr.mxu0 0.0
  %456 = vmatpush1.msra.mxu0 0.0
  %457 = vmatprep.subr.mxu0 0.0
  %458 = vmatpush1.msra.mxu0 0.0
  %459 = vmatprep.subr.mxu0 0.0
  %460 = vmatpush1.msra.mxu0 0.0
  %461 = vmatprep.subr.mxu0 0.0
  %462 = vmatpush1.msra.mxu0 0.0
  %463 = vmatprep.subr.mxu0 0.0
  %464 = vmatpush1.msra.mxu0 0.0
  %465 = vmatprep.subr.mxu0 0.0
  %466 = vmatpush1.msra.mxu0 0.0
  %467 = vmatprep.subr.mxu0 0.0
  %468 = vmatpush1.msra.mxu0 0.0
  %469 = vmatprep.subr.mxu0 0.0
  %470 = vmatpush1.msra.mxu0 0.0
  %471 = vmatprep.subr.mxu0 0.0
  %472 = vmatpush1.msra.mxu0 0.0
  %473 = vmatprep.subr.mxu0 0.0
  %474 = vmatpush1.msra.mxu0 0.0
  %475 = vmatprep.subr.mxu0 0.0
  %476 = vmatpush1.msra.mxu0 0.0
  %477 = vmatprep.subr.mxu0 0.0
  %478 = vmatpush1.msra.mxu0 0.0
  %479 = vmatprep.mubr.f32.mxu0 0.0
  %v480 = vand.u32 %v106, 4294901760
  %v481 = vsub.f32 %v106, %v480
  %482 = vmatmul.mubr.f32.gmra.mrb[0].mxu0 %v481
  %v483 = vpop.f32.mrb[0].mxu0
  %v484 = vadd.f32 %v374, %v483
  %v485 = vpop.f32.mrb[0].mxu0
  %486 = vmatprep.mubr.f32.mxu0 0.0
  %v487 = vand.u32 %v108, 4294901760
  %v488 = vsub.f32 %v108, %v487
  %489 = vmatmul.mubr.f32.gmra.mrb[0].mxu0 %v488
  %v490 = vpop.f32.mrb[0].mxu0
  %v491 = vadd.f32 %v380, %v490
  %v492 = vpop.f32.mrb[0].mxu0
  %493 = vdwg.mxu0
  %494 = vmatprep.subr.mxu0 0.0
  %v495 = vand.u32 %v109, 4294901760
  %496 = vmatpush1.msra.mxu0 %v495
  %497 = vmatprep.subr.mxu0 0.0
  %v498 = vand.u32 %v110, 4294901760
  %499 = vmatpush1.msra.mxu0 %v498
  %500 = vmatprep.subr.mxu0 0.0
  %v501 = vand.u32 %v111, 4294901760
  %502 = vmatpush1.msra.mxu0 %v501
  %503 = vmatprep.subr.mxu0 0.0
  %v504 = vand.u32 %v112, 4294901760
  %505 = vmatpush1.msra.mxu0 %v504
  %506 = vmatprep.subr.mxu0 0.0
  %v507 = vand.u32 %v113, 4294901760
  %508 = vmatpush1.msra.mxu0 %v507
  %509 = vmatprep.subr.mxu0 0.0
  %v510 = vand.u32 %v114, 4294901760
  %511 = vmatpush1.msra.mxu0 %v510
  %512 = vmatprep.subr.mxu0 0.0
  %v513 = vand.u32 %v115, 4294901760
  %514 = vmatpush1.msra.mxu0 %v513
  %515 = vmatprep.subr.mxu0 0.0
  %v516 = vand.u32 %v116, 4294901760
  %517 = vmatpush1.msra.mxu0 %v516
  %518 = vmatprep.subr.mxu0 0.0
  %v519 = vand.u32 %v117, 4294901760
  %520 = vmatpush1.msra.mxu0 %v519
  %521 = vmatprep.subr.mxu0 0.0
  %v522 = vand.u32 %v118, 4294901760
  %523 = vmatpush1.msra.mxu0 %v522
  %524 = vmatprep.subr.mxu0 0.0
  %v525 = vand.u32 %v119, 4294901760
  %526 = vmatpush1.msra.mxu0 %v525
  %527 = vmatprep.subr.mxu0 0.0
  %v528 = vand.u32 %v120, 4294901760
  %529 = vmatpush1.msra.mxu0 %v528
  %530 = vmatprep.subr.mxu0 0.0
  %v531 = vand.u32 %v121, 4294901760
  %532 = vmatpush1.msra.mxu0 %v531
  %533 = vmatprep.subr.mxu0 0.0
  %v534 = vand.u32 %v122, 4294901760
  %535 = vmatpush1.msra.mxu0 %v534
  %536 = vmatprep.subr.mxu0 0.0
  %v537 = vand.u32 %v123, 4294901760
  %538 = vmatpush1.msra.mxu0 %v537
  %539 = vmatprep.subr.mxu0 0.0
  %v540 = vand.u32 %v124, 4294901760
  %541 = vmatpush1.msra.mxu0 %v540
  %542 = vmatprep.subr.mxu0 0.0
  %543 = vmatpush1.msra.mxu0 0.0
  %544 = vmatprep.subr.mxu0 0.0
  %545 = vmatpush1.msra.mxu0 0.0
  %546 = vmatprep.subr.mxu0 0.0
  %547 = vmatpush1.msra.mxu0 0.0
  %548 = vmatprep.subr.mxu0 0.0
  %549 = vmatpush1.msra.mxu0 0.0
  %550 = vmatprep.subr.mxu0 0.0
  %551 = vmatpush1.msra.mxu0 0.0
  %552 = vmatprep.subr.mxu0 0.0
  %553 = vmatpush1.msra.mxu0 0.0
  %554 = vmatprep.subr.mxu0 0.0
  %555 = vmatpush1.msra.mxu0 0.0
  %556 = vmatprep.subr.mxu0 0.0
  %557 = vmatpush1.msra.mxu0 0.0
  %558 = vmatprep.subr.mxu0 0.0
  %559 = vmatpush1.msra.mxu0 0.0
  %560 = vmatprep.subr.mxu0 0.0
  %561 = vmatpush1.msra.mxu0 0.0
  %562 = vmatprep.subr.mxu0 0.0
  %563 = vmatpush1.msra.mxu0 0.0
  %564 = vmatprep.subr.mxu0 0.0
  %565 = vmatpush1.msra.mxu0 0.0
  %566 = vmatprep.subr.mxu0 0.0
  %567 = vmatpush1.msra.mxu0 0.0
  %568 = vmatprep.subr.mxu0 0.0
  %569 = vmatpush1.msra.mxu0 0.0
  %570 = vmatprep.subr.mxu0 0.0
  %571 = vmatpush1.msra.mxu0 0.0
  %572 = vmatprep.subr.mxu0 0.0
  %573 = vmatpush1.msra.mxu0 0.0
  %574 = vmatprep.mubr.f32.mxu0 0.0
  %v575 = vand.u32 %v106, 4294901760
  %v576 = vsub.f32 %v106, %v575
  %v577 = vand.u32 %v576, 4294901760
  %578 = vmatmul.mubr.f32.gmra.mrb[0].mxu0 %v577
  %v579 = vpop.f32.mrb[0].mxu0
  %v580 = vadd.f32 %v484, %v579
  %v581 = vpop.f32.mrb[0].mxu0
  %582 = vmatprep.mubr.f32.mxu0 0.0
  %v583 = vand.u32 %v108, 4294901760
  %v584 = vsub.f32 %v108, %v583
  %v585 = vand.u32 %v584, 4294901760
  %586 = vmatmul.mubr.f32.gmra.mrb[0].mxu0 %v585
  %v587 = vpop.f32.mrb[0].mxu0
  %v588 = vadd.f32 %v491, %v587
  %v589 = vpop.f32.mrb[0].mxu0
  %590 = vdwg.mxu0
  %591 = vmatprep.subr.mxu0 0.0
  %v592 = vand.u32 %v109, 4294901760
  %v593 = vsub.f32 %v109, %v592
  %v594 = vand.u32 %v593, 4294901760
  %595 = vmatpush1.msra.mxu0 %v594
  %596 = vmatprep.subr.mxu0 0.0
  %v597 = vand.u32 %v110, 4294901760
  %v598 = vsub.f32 %v110, %v597
  %v599 = vand.u32 %v598, 4294901760
  %600 = vmatpush1.msra.mxu0 %v599
  %601 = vmatprep.subr.mxu0 0.0
  %v602 = vand.u32 %v111, 4294901760
  %v603 = vsub.f32 %v111, %v602
  %v604 = vand.u32 %v603, 4294901760
  %605 = vmatpush1.msra.mxu0 %v604
  %606 = vmatprep.subr.mxu0 0.0
  %v607 = vand.u32 %v112, 4294901760
  %v608 = vsub.f32 %v112, %v607
  %v609 = vand.u32 %v608, 4294901760
  %610 = vmatpush1.msra.mxu0 %v609
  %611 = vmatprep.subr.mxu0 0.0
  %v612 = vand.u32 %v113, 4294901760
  %v613 = vsub.f32 %v113, %v612
  %v614 = vand.u32 %v613, 4294901760
  %615 = vmatpush1.msra.mxu0 %v614
  %616 = vmatprep.subr.mxu0 0.0
  %v617 = vand.u32 %v114, 4294901760
  %v618 = vsub.f32 %v114, %v617
  %v619 = vand.u32 %v618, 4294901760
  %620 = vmatpush1.msra.mxu0 %v619
  %621 = vmatprep.subr.mxu0 0.0
  %v622 = vand.u32 %v115, 4294901760
  %v623 = vsub.f32 %v115, %v622
  %v624 = vand.u32 %v623, 4294901760
  %625 = vmatpush1.msra.mxu0 %v624
  %626 = vmatprep.subr.mxu0 0.0
  %v627 = vand.u32 %v116, 4294901760
  %v628 = vsub.f32 %v116, %v627
  %v629 = vand.u32 %v628, 4294901760
  %630 = vmatpush1.msra.mxu0 %v629
  %631 = vmatprep.subr.mxu0 0.0
  %v632 = vand.u32 %v117, 4294901760
  %v633 = vsub.f32 %v117, %v632
  %v634 = vand.u32 %v633, 4294901760
  %635 = vmatpush1.msra.mxu0 %v634
  %636 = vmatprep.subr.mxu0 0.0
  %v637 = vand.u32 %v118, 4294901760
  %v638 = vsub.f32 %v118, %v637
  %v639 = vand.u32 %v638, 4294901760
  %640 = vmatpush1.msra.mxu0 %v639
  %641 = vmatprep.subr.mxu0 0.0
  %v642 = vand.u32 %v119, 4294901760
  %v643 = vsub.f32 %v119, %v642
  %v644 = vand.u32 %v643, 4294901760
  %645 = vmatpush1.msra.mxu0 %v644
  %646 = vmatprep.subr.mxu0 0.0
  %v647 = vand.u32 %v120, 4294901760
  %v648 = vsub.f32 %v120, %v647
  %v649 = vand.u32 %v648, 4294901760
  %650 = vmatpush1.msra.mxu0 %v649
  %651 = vmatprep.subr.mxu0 0.0
  %v652 = vand.u32 %v121, 4294901760
  %v653 = vsub.f32 %v121, %v652
  %v654 = vand.u32 %v653, 4294901760
  %655 = vmatpush1.msra.mxu0 %v654
  %656 = vmatprep.subr.mxu0 0.0
  %v657 = vand.u32 %v122, 4294901760
  %v658 = vsub.f32 %v122, %v657
  %v659 = vand.u32 %v658, 4294901760
  %660 = vmatpush1.msra.mxu0 %v659
  %661 = vmatprep.subr.mxu0 0.0
  %v662 = vand.u32 %v123, 4294901760
  %v663 = vsub.f32 %v123, %v662
  %v664 = vand.u32 %v663, 4294901760
  %665 = vmatpush1.msra.mxu0 %v664
  %666 = vmatprep.subr.mxu0 0.0
  %v667 = vand.u32 %v124, 4294901760
  %v668 = vsub.f32 %v124, %v667
  %v669 = vand.u32 %v668, 4294901760
  %670 = vmatpush1.msra.mxu0 %v669
  %671 = vmatprep.subr.mxu0 0.0
  %672 = vmatpush1.msra.mxu0 0.0
  %673 = vmatprep.subr.mxu0 0.0
  %674 = vmatpush1.msra.mxu0 0.0
  %675 = vmatprep.subr.mxu0 0.0
  %676 = vmatpush1.msra.mxu0 0.0
  %677 = vmatprep.subr.mxu0 0.0
  %678 = vmatpush1.msra.mxu0 0.0
  %679 = vmatprep.subr.mxu0 0.0
  %680 = vmatpush1.msra.mxu0 0.0
  %681 = vmatprep.subr.mxu0 0.0
  %682 = vmatpush1.msra.mxu0 0.0
  %683 = vmatprep.subr.mxu0 0.0
  %684 = vmatpush1.msra.mxu0 0.0
  %685 = vmatprep.subr.mxu0 0.0
  %686 = vmatpush1.msra.mxu0 0.0
  %687 = vmatprep.subr.mxu0 0.0
  %688 = vmatpush1.msra.mxu0 0.0
  %689 = vmatprep.subr.mxu0 0.0
  %690 = vmatpush1.msra.mxu0 0.0
  %691 = vmatprep.subr.mxu0 0.0
  %692 = vmatpush1.msra.mxu0 0.0
  %693 = vmatprep.subr.mxu0 0.0
  %694 = vmatpush1.msra.mxu0 0.0
  %695 = vmatprep.subr.mxu0 0.0
  %696 = vmatpush1.msra.mxu0 0.0
  %697 = vmatprep.subr.mxu0 0.0
  %698 = vmatpush1.msra.mxu0 0.0
  %699 = vmatprep.subr.mxu0 0.0
  %700 = vmatpush1.msra.mxu0 0.0
  %701 = vmatprep.subr.mxu0 0.0
  %702 = vmatpush1.msra.mxu0 0.0
  %703 = vmatprep.mubr.f32.mxu0 0.0
  %v704 = vand.u32 %v106, 4294901760
  %705 = vmatmul.mubr.f32.gmra.mrb[0].mxu0 %v704
  %v706 = vpop.f32.mrb[0].mxu0
  %v707 = vadd.f32 %v580, %v706
  %v708 = vpop.f32.mrb[0].mxu0
  %709 = vmatprep.mubr.f32.mxu0 0.0
  %v710 = vand.u32 %v108, 4294901760
  %711 = vmatmul.mubr.f32.gmra.mrb[0].mxu0 %v710
  %v712 = vpop.f32.mrb[0].mxu0
  %v713 = vadd.f32 %v588, %v712
  %v714 = vpop.f32.mrb[0].mxu0
  %715 = vdwg.mxu0
  %716 = vmatprep.subr.mxu0 0.0
  %v717 = vand.u32 %v109, 4294901760
  %718 = vmatpush1.msra.mxu0 %v717
  %719 = vmatprep.subr.mxu0 0.0
  %v720 = vand.u32 %v110, 4294901760
  %721 = vmatpush1.msra.mxu0 %v720
  %722 = vmatprep.subr.mxu0 0.0
  %v723 = vand.u32 %v111, 4294901760
  %724 = vmatpush1.msra.mxu0 %v723
  %725 = vmatprep.subr.mxu0 0.0
  %v726 = vand.u32 %v112, 4294901760
  %727 = vmatpush1.msra.mxu0 %v726
  %728 = vmatprep.subr.mxu0 0.0
  %v729 = vand.u32 %v113, 4294901760
  %730 = vmatpush1.msra.mxu0 %v729
  %731 = vmatprep.subr.mxu0 0.0
  %v732 = vand.u32 %v114, 4294901760
  %733 = vmatpush1.msra.mxu0 %v732
  %734 = vmatprep.subr.mxu0 0.0
  %v735 = vand.u32 %v115, 4294901760
  %736 = vmatpush1.msra.mxu0 %v735
  %737 = vmatprep.subr.mxu0 0.0
  %v738 = vand.u32 %v116, 4294901760
  %739 = vmatpush1.msra.mxu0 %v738
  %740 = vmatprep.subr.mxu0 0.0
  %v741 = vand.u32 %v117, 4294901760
  %742 = vmatpush1.msra.mxu0 %v741
  %743 = vmatprep.subr.mxu0 0.0
  %v744 = vand.u32 %v118, 4294901760
  %745 = vmatpush1.msra.mxu0 %v744
  %746 = vmatprep.subr.mxu0 0.0
  %v747 = vand.u32 %v119, 4294901760
  %748 = vmatpush1.msra.mxu0 %v747
  %749 = vmatprep.subr.mxu0 0.0
  %v750 = vand.u32 %v120, 4294901760
  %751 = vmatpush1.msra.mxu0 %v750
  %752 = vmatprep.subr.mxu0 0.0
  %v753 = vand.u32 %v121, 4294901760
  %754 = vmatpush1.msra.mxu0 %v753
  %755 = vmatprep.subr.mxu0 0.0
  %v756 = vand.u32 %v122, 4294901760
  %757 = vmatpush1.msra.mxu0 %v756
  %758 = vmatprep.subr.mxu0 0.0
  %v759 = vand.u32 %v123, 4294901760
  %760 = vmatpush1.msra.mxu0 %v759
  %761 = vmatprep.subr.mxu0 0.0
  %v762 = vand.u32 %v124, 4294901760
  %763 = vmatpush1.msra.mxu0 %v762
  %764 = vmatprep.subr.mxu0 0.0
  %765 = vmatpush1.msra.mxu0 0.0
  %766 = vmatprep.subr.mxu0 0.0
  %767 = vmatpush1.msra.mxu0 0.0
  %768 = vmatprep.subr.mxu0 0.0
  %769 = vmatpush1.msra.mxu0 0.0
  %770 = vmatprep.subr.mxu0 0.0
  %771 = vmatpush1.msra.mxu0 0.0
  %772 = vmatprep.subr.mxu0 0.0
  %773 = vmatpush1.msra.mxu0 0.0
  %774 = vmatprep.subr.mxu0 0.0
  %775 = vmatpush1.msra.mxu0 0.0
  %776 = vmatprep.subr.mxu0 0.0
  %777 = vmatpush1.msra.mxu0 0.0
  %778 = vmatprep.subr.mxu0 0.0
  %779 = vmatpush1.msra.mxu0 0.0
  %780 = vmatprep.subr.mxu0 0.0
  %781 = vmatpush1.msra.mxu0 0.0
  %782 = vmatprep.subr.mxu0 0.0
  %783 = vmatpush1.msra.mxu0 0.0
  %784 = vmatprep.subr.mxu0 0.0
  %785 = vmatpush1.msra.mxu0 0.0
  %786 = vmatprep.subr.mxu0 0.0
  %787 = vmatpush1.msra.mxu0 0.0
  %788 = vmatprep.subr.mxu0 0.0
  %789 = vmatpush1.msra.mxu0 0.0
  %790 = vmatprep.subr.mxu0 0.0
  %791 = vmatpush1.msra.mxu0 0.0
  %792 = vmatprep.subr.mxu0 0.0
  %793 = vmatpush1.msra.mxu0 0.0
  %794 = vmatprep.subr.mxu0 0.0
  %795 = vmatpush1.msra.mxu0 0.0
  %796 = vmatprep.mubr.f32.mxu0 0.0
  %v797 = vand.u32 %v106, 4294901760
  %798 = vmatmul.mubr.f32.gmra.mrb[0].mxu0 %v797
  %v799 = vpop.f32.mrb[0].mxu0
  %v800 = vadd.f32 %v707, %v799
  %v801 = vpop.f32.mrb[0].mxu0
  %802 = vmatprep.mubr.f32.mxu0 0.0
  %v803 = vand.u32 %v108, 4294901760
  %804 = vmatmul.mubr.f32.gmra.mrb[0].mxu0 %v803
  %v805 = vpop.f32.mrb[0].mxu0
  %v806 = vadd.f32 %v713, %v805
  %v807 = vpop.f32.mrb[0].mxu0
  %808 = vdwg.mxu0
  %v809 = vrcp.pop %v800
  %v810 = vmul.f32 %v106, %v809
  %v811 = vrcp.pop %v806
  %v812 = vmul.f32 %v108, %v811
  %813 = vst [vmem:[%s2] sm:$0xff] %v810
  %814 = vst [vmem:[%s2 + $0x8] sm:$0xff] %v812
  // Predicated region
  $region10: #{_pallas_softmax.1} parent=0 // pred_check
    _
  $region11: #{_pallas_softmax.1} parent=0 // pred_check_branch
    %816 = sbr.rel (0) target = $region13
  $region12: #{_pallas_softmax.1} parent=0 // pred_region
    _
  $region13: #{_pallas_softmax.1} parent=0 // pred_fallthru
    _
  // Predicated region
  $region14: #{_pallas_softmax.1} parent=0 // pred_check
    _
  $region15: #{_pallas_softmax.1} parent=0 // pred_check_branch
    %818 = sbr.rel (0) target = $region17
  $region16: #{_pallas_softmax.1} parent=0 // pred_region
    _
  $region17: #{_pallas_softmax.1} parent=0 // pred_fallthru
    _

</llo_original>
